<compile_context>
chip_gen: v7x
topology: tpu7x:2x2x1
jax: 0.10.0
libtpu: 0.0.40
codegen_flags: <defaults>
</compile_context>

<pallas_src>
import functools

import jax
import jax.numpy as jnp
import numpy as np
from jax.experimental import pallas as pl
from jax.experimental.pallas import tpu as pltpu


def _fused_conv3x3_bn_relu_kernel(x_ref, w_ref, mask_ref, o_ref, col_ref,
                                  *, H, W, Cin, block_n, K):
    """relu(bn(conv3x3(x))) for `block_n` images, stored NCHW-flat.

    x_ref:    (block_n, Cin, H*W)   input, NCHW flattened over space
    w_ref:    (Cout, K_pad)         BN-scale-folded conv weight; column K holds
                                    the folded BN shift, columns > K are zero
    mask_ref: (8*Cin, H*W)          per-boundary-tap zero-padding masks, already
                                    replicated over Cin (center tap omitted)
    o_ref:    (block_n, Cout, H*W)  output, NCHW flattened over space
    col_ref:  (K_pad, block_n*H*W)  VMEM scratch: im2col matrix + bias row
    """
    HW = H * W
    NHW = block_n * HW
    K_pad = col_ref.shape[0]

    # Bias row(s): ones so weight column K contributes the folded BN shift;
    # the remaining alignment-pad columns of the weight are zero, so the ones
    # there contribute nothing (and no stale-VMEM garbage reaches the MXU).
    col_ref[pl.ds(K, K_pad - K), :] = jnp.ones((K_pad - K, NHW), jnp.float32)

    # im2col: for tap (kh, kw) the contribution at flat position i is
    # x[:, i + (kh-1)*W + (kw-1)] where in-bounds, else 0.  The shift is a
    # static lane roll (XLU slot); validity is a precomputed constant mask
    # (one VPU multiply, skipped for the always-in-bounds center tap).
    for n in range(block_n):
        x = x_ref[n]                                   # (Cin, HW)
        bt = 0                                         # boundary-tap counter
        for kh in range(3):
            for kw in range(3):
                t = kh * 3 + kw
                d = (kh - 1) * W + (kw - 1)
                if d:
                    shifted = pltpu.roll(x, (-d) % HW, axis=1)
                    shifted = shifted * mask_ref[pl.ds(bt * Cin, Cin), :]
                    bt += 1
                else:                                   # center tap: no roll/mask
                    shifted = x
                col_ref[pl.ds(t * Cin, Cin), pl.ds(n * HW, HW)] = shifted

    # One MXU matmul: (Cout, K_pad) @ (K_pad, block_n*HW) -> (Cout, block_n*HW),
    # f32 accumulate.  BN scale/shift already folded in -> epilogue is just ReLU.
    acc = jnp.dot(w_ref[...], col_ref[...], preferred_element_type=jnp.float32)
    h = jnp.maximum(acc, 0.0).astype(o_ref.dtype)

    # Lane-dense stores, one per image (slices are lane-aligned multiples of HW).
    for n in range(block_n):
        o_ref[n] = h[:, n * HW:(n + 1) * HW]


def _edge_masks(H, W, Cin):
    """(8*Cin, H*W) f32 constant: 1 where the shifted boundary tap stays in-bounds.

    Rows are the 8 non-center taps in (kh, kw) order, each replicated Cin times,
    so the kernel can use them with a plain load (no sublane broadcast)."""
    ih = np.arange(H)[:, None]
    iw = np.arange(W)[None, :]
    rows = []
    for kh in range(3):
        for kw in range(3):
            if kh == 1 and kw == 1:
                continue
            dh, dw = kh - 1, kw - 1
            m = ((ih + dh >= 0) & (ih + dh < H) &
                 (iw + dw >= 0) & (iw + dw < W)).reshape(1, H * W)
            rows.append(np.broadcast_to(m, (Cin, H * W)))
    return np.concatenate(rows, axis=0).astype(np.float32)


def embedding_net_forward(x_nchw, params, eps=1e-5, block_n=None):
    """Pallas forward of EmbeddingNet: relu(bn(conv2d(x, conv0, pad=1))).view(N, -1)."""
    N, Cin, H, W = x_nchw.shape
    HW = H * W
    w_oihw = params["conv0"].astype(jnp.float32)              # (Cout, Cin, 3, 3)
    Cout = w_oihw.shape[0]

    # Default: whole batch in a single grid step (best on single-TC v5e/v6e).
    # On v7x with larger batches, set block_n so each TC gets a batch block.
    if block_n is None:
        block_n = N
    assert N % block_n == 0, (N, block_n)

    K = 9 * Cin
    K_pad = ((K + 1 + 7) // 8) * 8          # +1 bias row, rounded to sublane tile

    # (Cout, Cin, 3, 3) -> (Cout, 3, 3, Cin) -> (Cout, 9*Cin); column index is
    # (kh*3 + kw)*Cin + cin, matching the in-kernel im2col row order.
    w_flat = jnp.transpose(w_oihw, (0, 2, 3, 1)).reshape(Cout, K)

    # Fold eval-mode BN: scale into the weight, shift into an extra bias column
    # (matched in-kernel by a ones row of the im2col matrix).
    scale = (params["bn_gamma"] / jnp.sqrt(params["bn_var"] + eps)).astype(jnp.float32)
    shift = (params["bn_beta"] - params["bn_mean"] * scale).astype(jnp.float32)
    w_aug = jnp.zeros((Cout, K_pad), jnp.float32)
    w_aug = w_aug.at[:, :K].set(w_flat * scale[:, None]).at[:, K].set(shift)

    masks = jnp.asarray(_edge_masks(H, W, Cin))               # compile-time constant

    # Free contiguous reshape: kernel consumes NCHW directly.
    x_flat = x_nchw.astype(jnp.float32).reshape(N, Cin, HW)

    kernel = functools.partial(_fused_conv3x3_bn_relu_kernel,
                               H=H, W=W, Cin=Cin, block_n=block_n, K=K)

    # TODO(synk): base_model.group0/group1/group2 are opaque submodules in the
    # provided spec and are treated as identity pass-throughs.

    out = pl.pallas_call(
        kernel,
        out_shape=jax.ShapeDtypeStruct((N, Cout, HW), jnp.float32),
        grid=(N // block_n,),
        in_specs=[
            pl.BlockSpec((block_n, Cin, HW), lambda i: (i, 0, 0)),
            pl.BlockSpec((Cout, K_pad), lambda i: (0, 0)),
            pl.BlockSpec((8 * Cin, HW), lambda i: (0, 0)),
        ],
        out_specs=pl.BlockSpec((block_n, Cout, HW), lambda i: (i, 0, 0)),
        scratch_shapes=[pltpu.VMEM((K_pad, block_n * HW), jnp.float32)],
        compiler_params=pltpu.CompilerParams(
            dimension_semantics=("parallel",)),
    )(x_flat, w_aug, masks)

    # Already NCHW-flattened per channel -> matches PyTorch's h.view(N, -1).
    return out.reshape(N, Cout * HW)


def _reference_forward(x_nchw, params, eps=1e-5):
    # Plain-JAX reference for correctness sanity check.
    h = jax.lax.conv_general_dilated(
        x_nchw.astype(jnp.float32), params["conv0"].astype(jnp.float32),
        window_strides=(1, 1), padding=((1, 1), (1, 1)),
        dimension_numbers=("NCHW", "OIHW", "NCHW"))
    scale = params["bn_gamma"] / jnp.sqrt(params["bn_var"] + eps)
    shift = params["bn_beta"] - params["bn_mean"] * scale
    h = h * scale[None, :, None, None] + shift[None, :, None, None]
    h = jnp.maximum(h, 0.0)
    return h.reshape(h.shape[0], -1)


if __name__ == "__main__":
    N, C_in, H, W = 2, 4, 16, 16
    C_out = 32

    key = jax.random.PRNGKey(0)
    k_x, k_w, k_g, k_b, k_m, k_v = jax.random.split(key, 6)

    x = jax.random.normal(k_x, (N, C_in, H, W), dtype=jnp.float32)
    params = {
        "conv0": 0.1 * jax.random.normal(k_w, (C_out, C_in, 3, 3),
                                         dtype=jnp.float32),
        "bn_gamma": 0.5 + jax.random.uniform(k_g, (C_out,), dtype=jnp.float32),
        "bn_beta": 0.1 * jax.random.normal(k_b, (C_out,), dtype=jnp.float32),
        "bn_mean": 0.1 * jax.random.normal(k_m, (C_out,), dtype=jnp.float32),
        "bn_var": 0.5 + jax.random.uniform(k_v, (C_out,), dtype=jnp.float32),
    }

    fwd = jax.jit(embedding_net_forward)
    out = jax.block_until_ready(fwd(x, params))
    ref = jax.block_until_ready(_reference_forward(x, params))

    assert out.shape == (N, C_out * H * W), out.shape
    err = jnp.max(jnp.abs(out - ref))
    assert jnp.allclose(out, ref, atol=1e-4, rtol=1e-4), (
        f"mismatch vs reference (max abs err {err})")

    print("KERNEL_OK")
</pallas_src>

<mosaic_0001>
module attributes {stable_mosaic.version = 11 : i64} {
  func.func @_fused_conv3x3_bn_relu_kernel(%arg0: i32, %arg1: memref<2x4x256xf32, #tpu.memory_space<vmem>>, %arg2: memref<32x40xf32, #tpu.memory_space<vmem>>, %arg3: memref<32x256xf32, #tpu.memory_space<vmem>>, %arg4: memref<2x32x256xf32, #tpu.memory_space<vmem>>, %arg5: memref<40x512xf32, #tpu.memory_space<vmem>>) attributes {dimension_semantics = [#tpu.dimension_semantics<parallel>], iteration_bounds = array<i64: 1>, scalar_prefetch = 0 : i64, scratch_operands = 1 : i64, tpu.core_type = #tpu.core_type<tc>, window_params = [{transform_indices = @transform_0, window_bounds = array<i64: 2, 4, 256>}, {pipeline_mode = #tpu.pipeline_mode<synchronous>, transform_indices = @transform_1, window_bounds = array<i64: 32, 40>}, {pipeline_mode = #tpu.pipeline_mode<synchronous>, transform_indices = @transform_2, window_bounds = array<i64: 32, 256>}, {transform_indices = @transform_3, window_bounds = array<i64: 2, 32, 256>}]} {
    %cst = arith.constant 1.000000e+00 : f32
    %0 = vector.broadcast %cst : f32 to vector<4x512xf32>
    %c36 = arith.constant 36 : index
    %c0 = arith.constant 0 : index
    %1 = vector.load %arg5[%c36, %c0] : memref<40x512xf32, #tpu.memory_space<vmem>>, vector<4x512xf32>
    tpu.vector_store %arg5[%c36, %c0], %0 {strides = array<i32>} : memref<40x512xf32, #tpu.memory_space<vmem>>, vector<4x512xf32>,
    %c0_0 = arith.constant 0 : index
    %c0_1 = arith.constant 0 : index
    %c0_2 = arith.constant 0 : index
    %2 = vector.load %arg1[%c0_0, %c0_1, %c0_2] : memref<2x4x256xf32, #tpu.memory_space<vmem>>, vector<1x4x256xf32>
    %3 = vector.shape_cast %2 : vector<1x4x256xf32> to vector<4x256xf32>
    %c17_i32 = arith.constant 17 : i32
    %4 = tpu.dynamic_rotate %3 by %c17_i32 dim 1 : vector<4x256xf32>, i32 -> vector<4x256xf32>
    %c0_3 = arith.constant 0 : index
    %c0_4 = arith.constant 0 : index
    %5 = vector.load %arg3[%c0_3, %c0_4] : memref<32x256xf32, #tpu.memory_space<vmem>>, vector<4x256xf32>
    %6 = arith.mulf %4, %5 : vector<4x256xf32>
    %c0_5 = arith.constant 0 : index
    %c0_6 = arith.constant 0 : index
    %7 = vector.load %arg5[%c0_5, %c0_6] : memref<40x512xf32, #tpu.memory_space<vmem>>, vector<4x256xf32>
    tpu.vector_store %arg5[%c0_5, %c0_6], %6 {strides = array<i32>} : memref<40x512xf32, #tpu.memory_space<vmem>>, vector<4x256xf32>,
    %c16_i32 = arith.constant 16 : i32
    %8 = tpu.dynamic_rotate %3 by %c16_i32 dim 1 : vector<4x256xf32>, i32 -> vector<4x256xf32>
    %c4 = arith.constant 4 : index
    %c0_7 = arith.constant 0 : index
    %9 = vector.load %arg3[%c4, %c0_7] : memref<32x256xf32, #tpu.memory_space<vmem>>, vector<4x256xf32>
    %10 = arith.mulf %8, %9 : vector<4x256xf32>
    %c4_8 = arith.constant 4 : index
    %c0_9 = arith.constant 0 : index
    %11 = vector.load %arg5[%c4_8, %c0_9] : memref<40x512xf32, #tpu.memory_space<vmem>>, vector<4x256xf32>
    tpu.vector_store %arg5[%c4_8, %c0_9], %10 {strides = array<i32>} : memref<40x512xf32, #tpu.memory_space<vmem>>, vector<4x256xf32>,
    %c15_i32 = arith.constant 15 : i32
    %12 = tpu.dynamic_rotate %3 by %c15_i32 dim 1 : vector<4x256xf32>, i32 -> vector<4x256xf32>
    %c8 = arith.constant 8 : index
    %c0_10 = arith.constant 0 : index
    %13 = vector.load %arg3[%c8, %c0_10] : memref<32x256xf32, #tpu.memory_space<vmem>>, vector<4x256xf32>
    %14 = arith.mulf %12, %13 : vector<4x256xf32>
    %c8_11 = arith.constant 8 : index
    %c0_12 = arith.constant 0 : index
    %15 = vector.load %arg5[%c8_11, %c0_12] : memref<40x512xf32, #tpu.memory_space<vmem>>, vector<4x256xf32>
    tpu.vector_store %arg5[%c8_11, %c0_12], %14 {strides = array<i32>} : memref<40x512xf32, #tpu.memory_space<vmem>>, vector<4x256xf32>,
    %c1_i32 = arith.constant 1 : i32
    %16 = tpu.dynamic_rotate %3 by %c1_i32 dim 1 : vector<4x256xf32>, i32 -> vector<4x256xf32>
    %c12 = arith.constant 12 : index
    %c0_13 = arith.constant 0 : index
    %17 = vector.load %arg3[%c12, %c0_13] : memref<32x256xf32, #tpu.memory_space<vmem>>, vector<4x256xf32>
    %18 = arith.mulf %16, %17 : vector<4x256xf32>
    %c12_14 = arith.constant 12 : index
    %c0_15 = arith.constant 0 : index
    %19 = vector.load %arg5[%c12_14, %c0_15] : memref<40x512xf32, #tpu.memory_space<vmem>>, vector<4x256xf32>
    tpu.vector_store %arg5[%c12_14, %c0_15], %18 {strides = array<i32>} : memref<40x512xf32, #tpu.memory_space<vmem>>, vector<4x256xf32>,
    %c16 = arith.constant 16 : index
    %c0_16 = arith.constant 0 : index
    %20 = vector.load %arg5[%c16, %c0_16] : memref<40x512xf32, #tpu.memory_space<vmem>>, vector<4x256xf32>
    tpu.vector_store %arg5[%c16, %c0_16], %3 {strides = array<i32>} : memref<40x512xf32, #tpu.memory_space<vmem>>, vector<4x256xf32>,
    %c255_i32 = arith.constant 255 : i32
    %21 = tpu.dynamic_rotate %3 by %c255_i32 dim 1 : vector<4x256xf32>, i32 -> vector<4x256xf32>
    %c16_17 = arith.constant 16 : index
    %c0_18 = arith.constant 0 : index
    %22 = vector.load %arg3[%c16_17, %c0_18] : memref<32x256xf32, #tpu.memory_space<vmem>>, vector<4x256xf32>
    %23 = arith.mulf %21, %22 : vector<4x256xf32>
    %c20 = arith.constant 20 : index
    %c0_19 = arith.constant 0 : index
    %24 = vector.load %arg5[%c20, %c0_19] : memref<40x512xf32, #tpu.memory_space<vmem>>, vector<4x256xf32>
    tpu.vector_store %arg5[%c20, %c0_19], %23 {strides = array<i32>} : memref<40x512xf32, #tpu.memory_space<vmem>>, vector<4x256xf32>,
    %c241_i32 = arith.constant 241 : i32
    %25 = tpu.dynamic_rotate %3 by %c241_i32 dim 1 : vector<4x256xf32>, i32 -> vector<4x256xf32>
    %c20_20 = arith.constant 20 : index
    %c0_21 = arith.constant 0 : index
    %26 = vector.load %arg3[%c20_20, %c0_21] : memref<32x256xf32, #tpu.memory_space<vmem>>, vector<4x256xf32>
    %27 = arith.mulf %25, %26 : vector<4x256xf32>
    %c24 = arith.constant 24 : index
    %c0_22 = arith.constant 0 : index
    %28 = vector.load %arg5[%c24, %c0_22] : memref<40x512xf32, #tpu.memory_space<vmem>>, vector<4x256xf32>
    tpu.vector_store %arg5[%c24, %c0_22], %27 {strides = array<i32>} : memref<40x512xf32, #tpu.memory_space<vmem>>, vector<4x256xf32>,
    %c240_i32 = arith.constant 240 : i32
    %29 = tpu.dynamic_rotate %3 by %c240_i32 dim 1 : vector<4x256xf32>, i32 -> vector<4x256xf32>
    %c24_23 = arith.constant 24 : index
    %c0_24 = arith.constant 0 : index
    %30 = vector.load %arg3[%c24_23, %c0_24] : memref<32x256xf32, #tpu.memory_space<vmem>>, vector<4x256xf32>
    %31 = arith.mulf %29, %30 : vector<4x256xf32>
    %c28 = arith.constant 28 : index
    %c0_25 = arith.constant 0 : index
    %32 = vector.load %arg5[%c28, %c0_25] : memref<40x512xf32, #tpu.memory_space<vmem>>, vector<4x256xf32>
    tpu.vector_store %arg5[%c28, %c0_25], %31 {strides = array<i32>} : memref<40x512xf32, #tpu.memory_space<vmem>>, vector<4x256xf32>,
    %c239_i32 = arith.constant 239 : i32
    %33 = tpu.dynamic_rotate %3 by %c239_i32 dim 1 : vector<4x256xf32>, i32 -> vector<4x256xf32>
    %c28_26 = arith.constant 28 : index
    %c0_27 = arith.constant 0 : index
    %34 = vector.load %arg3[%c28_26, %c0_27] : memref<32x256xf32, #tpu.memory_space<vmem>>, vector<4x256xf32>
    %35 = arith.mulf %33, %34 : vector<4x256xf32>
    %c32 = arith.constant 32 : index
    %c0_28 = arith.constant 0 : index
    %36 = vector.load %arg5[%c32, %c0_28] : memref<40x512xf32, #tpu.memory_space<vmem>>, vector<4x256xf32>
    tpu.vector_store %arg5[%c32, %c0_28], %35 {strides = array<i32>} : memref<40x512xf32, #tpu.memory_space<vmem>>, vector<4x256xf32>,
    %c1 = arith.constant 1 : index
    %c0_29 = arith.constant 0 : index
    %c0_30 = arith.constant 0 : index
    %37 = vector.load %arg1[%c1, %c0_29, %c0_30] : memref<2x4x256xf32, #tpu.memory_space<vmem>>, vector<1x4x256xf32>
    %38 = vector.shape_cast %37 : vector<1x4x256xf32> to vector<4x256xf32>
    %c17_i32_31 = arith.constant 17 : i32
    %39 = tpu.dynamic_rotate %38 by %c17_i32_31 dim 1 : vector<4x256xf32>, i32 -> vector<4x256xf32>
    %c0_32 = arith.constant 0 : index
    %c0_33 = arith.constant 0 : index
    %40 = vector.load %arg3[%c0_32, %c0_33] : memref<32x256xf32, #tpu.memory_space<vmem>>, vector<4x256xf32>
    %41 = arith.mulf %39, %40 : vector<4x256xf32>
    %c0_34 = arith.constant 0 : index
    %c256 = arith.constant 256 : index
    %42 = vector.load %arg5[%c0_34, %c256] : memref<40x512xf32, #tpu.memory_space<vmem>>, vector<4x256xf32>
    tpu.vector_store %arg5[%c0_34, %c256], %41 {strides = array<i32>} : memref<40x512xf32, #tpu.memory_space<vmem>>, vector<4x256xf32>,
    %c16_i32_35 = arith.constant 16 : i32
    %43 = tpu.dynamic_rotate %38 by %c16_i32_35 dim 1 : vector<4x256xf32>, i32 -> vector<4x256xf32>
    %c4_36 = arith.constant 4 : index
    %c0_37 = arith.constant 0 : index
    %44 = vector.load %arg3[%c4_36, %c0_37] : memref<32x256xf32, #tpu.memory_space<vmem>>, vector<4x256xf32>
    %45 = arith.mulf %43, %44 : vector<4x256xf32>
    %c4_38 = arith.constant 4 : index
    %c256_39 = arith.constant 256 : index
    %46 = vector.load %arg5[%c4_38, %c256_39] : memref<40x512xf32, #tpu.memory_space<vmem>>, vector<4x256xf32>
    tpu.vector_store %arg5[%c4_38, %c256_39], %45 {strides = array<i32>} : memref<40x512xf32, #tpu.memory_space<vmem>>, vector<4x256xf32>,
    %c15_i32_40 = arith.constant 15 : i32
    %47 = tpu.dynamic_rotate %38 by %c15_i32_40 dim 1 : vector<4x256xf32>, i32 -> vector<4x256xf32>
    %c8_41 = arith.constant 8 : index
    %c0_42 = arith.constant 0 : index
    %48 = vector.load %arg3[%c8_41, %c0_42] : memref<32x256xf32, #tpu.memory_space<vmem>>, vector<4x256xf32>
    %49 = arith.mulf %47, %48 : vector<4x256xf32>
    %c8_43 = arith.constant 8 : index
    %c256_44 = arith.constant 256 : index
    %50 = vector.load %arg5[%c8_43, %c256_44] : memref<40x512xf32, #tpu.memory_space<vmem>>, vector<4x256xf32>
    tpu.vector_store %arg5[%c8_43, %c256_44], %49 {strides = array<i32>} : memref<40x512xf32, #tpu.memory_space<vmem>>, vector<4x256xf32>,
    %c1_i32_45 = arith.constant 1 : i32
    %51 = tpu.dynamic_rotate %38 by %c1_i32_45 dim 1 : vector<4x256xf32>, i32 -> vector<4x256xf32>
    %c12_46 = arith.constant 12 : index
    %c0_47 = arith.constant 0 : index
    %52 = vector.load %arg3[%c12_46, %c0_47] : memref<32x256xf32, #tpu.memory_space<vmem>>, vector<4x256xf32>
    %53 = arith.mulf %51, %52 : vector<4x256xf32>
    %c12_48 = arith.constant 12 : index
    %c256_49 = arith.constant 256 : index
    %54 = vector.load %arg5[%c12_48, %c256_49] : memref<40x512xf32, #tpu.memory_space<vmem>>, vector<4x256xf32>
    tpu.vector_store %arg5[%c12_48, %c256_49], %53 {strides = array<i32>} : memref<40x512xf32, #tpu.memory_space<vmem>>, vector<4x256xf32>,
    %c16_50 = arith.constant 16 : index
    %c256_51 = arith.constant 256 : index
    %55 = vector.load %arg5[%c16_50, %c256_51] : memref<40x512xf32, #tpu.memory_space<vmem>>, vector<4x256xf32>
    tpu.vector_store %arg5[%c16_50, %c256_51], %38 {strides = array<i32>} : memref<40x512xf32, #tpu.memory_space<vmem>>, vector<4x256xf32>,
    %c255_i32_52 = arith.constant 255 : i32
    %56 = tpu.dynamic_rotate %38 by %c255_i32_52 dim 1 : vector<4x256xf32>, i32 -> vector<4x256xf32>
    %c16_53 = arith.constant 16 : index
    %c0_54 = arith.constant 0 : index
    %57 = vector.load %arg3[%c16_53, %c0_54] : memref<32x256xf32, #tpu.memory_space<vmem>>, vector<4x256xf32>
    %58 = arith.mulf %56, %57 : vector<4x256xf32>
    %c20_55 = arith.constant 20 : index
    %c256_56 = arith.constant 256 : index
    %59 = vector.load %arg5[%c20_55, %c256_56] : memref<40x512xf32, #tpu.memory_space<vmem>>, vector<4x256xf32>
    tpu.vector_store %arg5[%c20_55, %c256_56], %58 {strides = array<i32>} : memref<40x512xf32, #tpu.memory_space<vmem>>, vector<4x256xf32>,
    %c241_i32_57 = arith.constant 241 : i32
    %60 = tpu.dynamic_rotate %38 by %c241_i32_57 dim 1 : vector<4x256xf32>, i32 -> vector<4x256xf32>
    %c20_58 = arith.constant 20 : index
    %c0_59 = arith.constant 0 : index
    %61 = vector.load %arg3[%c20_58, %c0_59] : memref<32x256xf32, #tpu.memory_space<vmem>>, vector<4x256xf32>
    %62 = arith.mulf %60, %61 : vector<4x256xf32>
    %c24_60 = arith.constant 24 : index
    %c256_61 = arith.constant 256 : index
    %63 = vector.load %arg5[%c24_60, %c256_61] : memref<40x512xf32, #tpu.memory_space<vmem>>, vector<4x256xf32>
    tpu.vector_store %arg5[%c24_60, %c256_61], %62 {strides = array<i32>} : memref<40x512xf32, #tpu.memory_space<vmem>>, vector<4x256xf32>,
    %c240_i32_62 = arith.constant 240 : i32
    %64 = tpu.dynamic_rotate %38 by %c240_i32_62 dim 1 : vector<4x256xf32>, i32 -> vector<4x256xf32>
    %c24_63 = arith.constant 24 : index
    %c0_64 = arith.constant 0 : index
    %65 = vector.load %arg3[%c24_63, %c0_64] : memref<32x256xf32, #tpu.memory_space<vmem>>, vector<4x256xf32>
    %66 = arith.mulf %64, %65 : vector<4x256xf32>
    %c28_65 = arith.constant 28 : index
    %c256_66 = arith.constant 256 : index
    %67 = vector.load %arg5[%c28_65, %c256_66] : memref<40x512xf32, #tpu.memory_space<vmem>>, vector<4x256xf32>
    tpu.vector_store %arg5[%c28_65, %c256_66], %66 {strides = array<i32>} : memref<40x512xf32, #tpu.memory_space<vmem>>, vector<4x256xf32>,
    %c239_i32_67 = arith.constant 239 : i32
    %68 = tpu.dynamic_rotate %38 by %c239_i32_67 dim 1 : vector<4x256xf32>, i32 -> vector<4x256xf32>
    %c28_68 = arith.constant 28 : index
    %c0_69 = arith.constant 0 : index
    %69 = vector.load %arg3[%c28_68, %c0_69] : memref<32x256xf32, #tpu.memory_space<vmem>>, vector<4x256xf32>
    %70 = arith.mulf %68, %69 : vector<4x256xf32>
    %c32_70 = arith.constant 32 : index
    %c256_71 = arith.constant 256 : index
    %71 = vector.load %arg5[%c32_70, %c256_71] : memref<40x512xf32, #tpu.memory_space<vmem>>, vector<4x256xf32>
    tpu.vector_store %arg5[%c32_70, %c256_71], %70 {strides = array<i32>} : memref<40x512xf32, #tpu.memory_space<vmem>>, vector<4x256xf32>,
    %c0_72 = arith.constant 0 : index
    %c0_73 = arith.constant 0 : index
    %72 = vector.load %arg2[%c0_72, %c0_73] : memref<32x40xf32, #tpu.memory_space<vmem>>, vector<32x40xf32>
    %c0_74 = arith.constant 0 : index
    %c0_75 = arith.constant 0 : index
    %73 = vector.load %arg5[%c0_74, %c0_75] : memref<40x512xf32, #tpu.memory_space<vmem>>, vector<40x512xf32>
    %cst_76 = arith.constant dense<0.000000e+00> : vector<32x512xf32>
    %74 = tpu.matmul %72, %73, %cst_76 {dimension_numbers = #tpu.dot_dimension_numbers<[1], [0], [0], [1], [0, 0, 1, 1], [], []>} : vector<32x40xf32>, vector<40x512xf32>, vector<32x512xf32> -> vector<32x512xf32>
    %cst_77 = arith.constant 0.000000e+00 : f32
    %75 = vector.broadcast %cst_77 : f32 to vector<32x512xf32>
    %76 = arith.maximumf %74, %75 : vector<32x512xf32>
    %77 = vector.extract_strided_slice %76 {offsets = [0, 0], sizes = [32, 256], strides = [1, 1]} : vector<32x512xf32> to vector<32x256xf32>
    %c0_78 = arith.constant 0 : index
    %c0_79 = arith.constant 0 : index
    %c0_80 = arith.constant 0 : index
    %78 = vector.load %arg4[%c0_78, %c0_79, %c0_80] : memref<2x32x256xf32, #tpu.memory_space<vmem>>, vector<1x32x256xf32>
    %79 = vector.shape_cast %78 : vector<1x32x256xf32> to vector<32x256xf32>
    %80 = vector.shape_cast %77 : vector<32x256xf32> to vector<1x32x256xf32>
    tpu.vector_store %arg4[%c0_78, %c0_79, %c0_80], %80 {strides = array<i32>} : memref<2x32x256xf32, #tpu.memory_space<vmem>>, vector<1x32x256xf32>,
    %81 = vector.extract_strided_slice %76 {offsets = [0, 256], sizes = [32, 256], strides = [1, 1]} : vector<32x512xf32> to vector<32x256xf32>
    %c1_81 = arith.constant 1 : index
    %c0_82 = arith.constant 0 : index
    %c0_83 = arith.constant 0 : index
    %82 = vector.load %arg4[%c1_81, %c0_82, %c0_83] : memref<2x32x256xf32, #tpu.memory_space<vmem>>, vector<1x32x256xf32>
    %83 = vector.shape_cast %82 : vector<1x32x256xf32> to vector<32x256xf32>
    %84 = vector.shape_cast %81 : vector<32x256xf32> to vector<1x32x256xf32>
    tpu.vector_store %arg4[%c1_81, %c0_82, %c0_83], %84 {strides = array<i32>} : memref<2x32x256xf32, #tpu.memory_space<vmem>>, vector<1x32x256xf32>,
    return
  }
  func.func @transform_0(%arg0: i32) -> (i32, i32, i32) {
    %c0_i32 = arith.constant 0 : i32
    %c0_i32_0 = arith.constant 0 : i32
    %c0_i32_1 = arith.constant 0 : i32
    return %arg0, %c0_i32, %c0_i32_0 : i32, i32, i32
  }
  func.func @transform_1(%arg0: i32) -> (i32, i32) {
    %c0_i32 = arith.constant 0 : i32
    %c0_i32_0 = arith.constant 0 : i32
    %c0_i32_1 = arith.constant 0 : i32
    return %c0_i32, %c0_i32_0 : i32, i32
  }
  func.func @transform_2(%arg0: i32) -> (i32, i32) {
    %c0_i32 = arith.constant 0 : i32
    %c0_i32_0 = arith.constant 0 : i32
    %c0_i32_1 = arith.constant 0 : i32
    return %c0_i32, %c0_i32_0 : i32, i32
  }
  func.func @transform_3(%arg0: i32) -> (i32, i32, i32) {
    %c0_i32 = arith.constant 0 : i32
    %c0_i32_0 = arith.constant 0 : i32
    %c0_i32_1 = arith.constant 0 : i32
    return %arg0, %c0_i32, %c0_i32_0 : i32, i32, i32
  }
}

</mosaic_0001>

<llo_original>
// kernel: embedding_net_forward.1
$region0: #{embedding_net_forward.1}
  #allocation0 [shape = 'u32[]', space=smem, size = 0x4, offset = 0x4, fixed_abs, tag = 'smem constant byte address 0x4 - core index']
  #allocation1 [shape = 'u32[144,128]{1,0:T(1,128)}', space=vmem, size = 0x12000, scoped, tag = 'internal scratch']
  #allocation2 [shape = 'f32[40,512]{1,0:T(8,128)}', space=vmem, size = 0x14000, scoped, tag = 'scratch operand']
  %s0 = inlined_call_operand.vmem [shape: f32[2,4,256], index: 0, kind: input, shape index: {}]
  %s1 = inlined_call_operand.vmem [shape: f32[32,40], index: 1, kind: input, shape index: {}]
  %s2 = inlined_call_operand.vmem [shape: f32[32,256], index: 2, kind: input, shape index: {}]
  %s3 = inlined_call_operand.vmem [shape: f32[2,32,256], index: 3, kind: output, shape index: {}]
  %s4 = sld [smem:[#allocation0]]
  $region22: #{embedding_net_forward.1} parent=0
    _
  %s6 = ssub.s32 1, %s4
  %s7 = scalar_select 0, %s6, %s4
  // Predicated region
  $region2: #{embedding_net_forward.1} parent=0 // pred_check
    _
  $region3: #{embedding_net_forward.1} parent=0 // pred_check_branch
    %9 = sbr.rel (0) target = $region5
  $region4: #{embedding_net_forward.1} parent=0 // pred_region
    _
  $region5: #{embedding_net_forward.1} parent=0 // pred_fallthru
    _
  // Predicated region
  $region6: #{embedding_net_forward.1} parent=0 // pred_check
    _
  $region7: #{embedding_net_forward.1} parent=0 // pred_check_branch
    %11 = sbr.rel (0) target = $region9
  $region8: #{embedding_net_forward.1} parent=0 // pred_region
    _
  $region9: #{embedding_net_forward.1} parent=0 // pred_fallthru
    _
  // Predicated region
  $region10: #{embedding_net_forward.1} parent=0 // pred_check
    _
  $region11: #{embedding_net_forward.1} parent=0 // pred_check_branch
    %13 = sbr.rel (0) target = $region13
  $region12: #{embedding_net_forward.1} parent=0 // pred_region
    _
  $region13: #{embedding_net_forward.1} parent=0 // pred_fallthru
    _
  %14 = vst [vmem:[#allocation2 + $0x80] sm:$0xf0] 1.0
  %15 = vst [vmem:[#allocation2 + $0x88] sm:$0xf0] 1.0
  %16 = vst [vmem:[#allocation2 + $0x90] sm:$0xf0] 1.0
  %17 = vst [vmem:[#allocation2 + $0x98] sm:$0xf0] 1.0
  %v18 = vld [vmem:[%s0] sm:$0xff]
  %v20 = vcombine.high %v18, %v18
  %22 = vrot.lane.b32.xlu0 %v18, 17
  %v23 = vpop.permute.xlu0 %22
  %24 = vrot.lane.b32.xlu0 %v20, 17
  %v25 = vpop.permute.xlu0 %24
  %v26 = vlaneseq
  %v27 = vand.u32 %v26, 127
  %vm28 = vcmp.lt.s32.totalorder %v27, 17
  %v29 = vsel %vm28, %v23, %v25
  %v30 = vsel %vm28, %v25, %v23
  %v31 = vld [vmem:[%s2] sm:$0xf]
  %v32 = vld [vmem:[%s2 + $0x8] sm:$0xf]
  %v33 = vmul.f32 %v30, %v31
  %v34 = vmul.f32 %v29, %v32
  %35 = vst [vmem:[#allocation2] sm:$0xf] %v33
  %36 = vst [vmem:[#allocation2 + $0x8] sm:$0xf] %v34
  %37 = vrot.lane.b32.xlu0 %v18, 16
  %v38 = vpop.permute.xlu0 %37
  %39 = vrot.lane.b32.xlu0 %v20, 16
  %v40 = vpop.permute.xlu0 %39
  %vm41 = vcmp.lt.s32.totalorder %v27, 16
  %v42 = vsel %vm41, %v38, %v40
  %v43 = vsel %vm41, %v40, %v38
  %v44 = vld [vmem:[%s2] sm:$0xf0]
  %v45 = vld [vmem:[%s2 + $0x8] sm:$0xf0]
  %v48 = vrot.slane %v44, 4
  %v49 = vrot.slane %v45, 4
  %v52 = vmul.f32 %v43, %v48
  %v53 = vmul.f32 %v42, %v49
  %v56 = vrot.slane %v52, 4
  %v57 = vrot.slane %v53, 4
  %60 = vst [vmem:[#allocation2] sm:$0xf0] %v56
  %61 = vst [vmem:[#allocation2 + $0x8] sm:$0xf0] %v57
  %62 = vrot.lane.b32.xlu0 %v18, 15
  %v63 = vpop.permute.xlu0 %62
  %64 = vrot.lane.b32.xlu0 %v20, 15
  %v65 = vpop.permute.xlu0 %64
  %vm66 = vcmp.lt.s32.totalorder %v27, 15
  %v67 = vsel %vm66, %v63, %v65
  %v68 = vsel %vm66, %v65, %v63
  %v69 = vld [vmem:[%s2 + $0x10] sm:$0xf]
  %v70 = vld [vmem:[%s2 + $0x18] sm:$0xf]
  %v71 = vmul.f32 %v68, %v69
  %v72 = vmul.f32 %v67, %v70
  %73 = vst [vmem:[#allocation2 + $0x20] sm:$0xf] %v71
  %74 = vst [vmem:[#allocation2 + $0x28] sm:$0xf] %v72
  %75 = vrot.lane.b32.xlu0 %v18, 1
  %v76 = vpop.permute.xlu0 %75
  %77 = vrot.lane.b32.xlu0 %v20, 1
  %v78 = vpop.permute.xlu0 %77
  %vm79 = vcmp.lt.s32.totalorder %v27, 1
  %v80 = vsel %vm79, %v76, %v78
  %v81 = vsel %vm79, %v78, %v76
  %v82 = vld [vmem:[%s2 + $0x10] sm:$0xf0]
  %v83 = vld [vmem:[%s2 + $0x18] sm:$0xf0]
  %v86 = vrot.slane %v82, 4
  %v87 = vrot.slane %v83, 4
  %v90 = vmul.f32 %v81, %v86
  %v91 = vmul.f32 %v80, %v87
  %v94 = vrot.slane %v90, 4
  %v95 = vrot.slane %v91, 4
  %98 = vst [vmem:[#allocation2 + $0x20] sm:$0xf0] %v94
  %99 = vst [vmem:[#allocation2 + $0x28] sm:$0xf0] %v95
  %100 = vst [vmem:[#allocation2 + $0x40] sm:$0xf] %v18
  %101 = vst [vmem:[#allocation2 + $0x48] sm:$0xf] %v20
  %102 = vrot.lane.b32.xlu0 %v18, 127
  %v103 = vpop.permute.xlu0 %102
  %104 = vrot.lane.b32.xlu0 %v20, 127
  %v105 = vpop.permute.xlu0 %104
  %vm106 = vcmp.lt.s32.totalorder %v27, 127
  %v107 = vsel %vm106, %v103, %v105
  %v108 = vsel %vm106, %v105, %v103
  %v109 = vld [vmem:[%s2 + $0x20] sm:$0xf]
  %v110 = vld [vmem:[%s2 + $0x28] sm:$0xf]
  %v111 = vmul.f32 %v107, %v109
  %v112 = vmul.f32 %v108, %v110
  %v115 = vrot.slane %v111, 4
  %v116 = vrot.slane %v112, 4
  %119 = vst [vmem:[#allocation2 + $0x40] sm:$0xf0] %v115
  %120 = vst [vmem:[#allocation2 + $0x48] sm:$0xf0] %v116
  %121 = vrot.lane.b32.xlu0 %v18, 113
  %v122 = vpop.permute.xlu0 %121
  %123 = vrot.lane.b32.xlu0 %v20, 113
  %v124 = vpop.permute.xlu0 %123
  %vm125 = vcmp.lt.s32.totalorder %v27, 113
  %v126 = vsel %vm125, %v122, %v124
  %v127 = vsel %vm125, %v124, %v122
  %v128 = vld [vmem:[%s2 + $0x20] sm:$0xf0]
  %v129 = vld [vmem:[%s2 + $0x28] sm:$0xf0]
  %v132 = vrot.slane %v128, 4
  %v133 = vrot.slane %v129, 4
  %v136 = vmul.f32 %v126, %v132
  %v137 = vmul.f32 %v127, %v133
  %138 = vst [vmem:[#allocation2 + $0x60] sm:$0xf] %v136
  %139 = vst [vmem:[#allocation2 + $0x68] sm:$0xf] %v137
  %140 = vrot.lane.b32.xlu0 %v18, 112
  %v141 = vpop.permute.xlu0 %140
  %142 = vrot.lane.b32.xlu0 %v20, 112
  %v143 = vpop.permute.xlu0 %142
  %vm144 = vcmp.lt.s32.totalorder %v27, 112
  %v145 = vsel %vm144, %v141, %v143
  %v146 = vsel %vm144, %v143, %v141
  %v147 = vld [vmem:[%s2 + $0x30] sm:$0xf]
  %v148 = vld [vmem:[%s2 + $0x38] sm:$0xf]
  %v149 = vmul.f32 %v145, %v147
  %v150 = vmul.f32 %v146, %v148
  %v153 = vrot.slane %v149, 4
  %v154 = vrot.slane %v150, 4
  %157 = vst [vmem:[#allocation2 + $0x60] sm:$0xf0] %v153
  %158 = vst [vmem:[#allocation2 + $0x68] sm:$0xf0] %v154
  %159 = vrot.lane.b32.xlu0 %v18, 111
  %v160 = vpop.permute.xlu0 %159
  %161 = vrot.lane.b32.xlu0 %v20, 111
  %v162 = vpop.permute.xlu0 %161
  %vm163 = vcmp.lt.s32.totalorder %v27, 111
  %v164 = vsel %vm163, %v160, %v162
  %v165 = vsel %vm163, %v162, %v160
  %v166 = vld [vmem:[%s2 + $0x30] sm:$0xf0]
  %v167 = vld [vmem:[%s2 + $0x38] sm:$0xf0]
  %v170 = vrot.slane %v166, 4
  %v171 = vrot.slane %v167, 4
  %v174 = vmul.f32 %v164, %v170
  %v175 = vmul.f32 %v165, %v171
  %176 = vst [vmem:[#allocation2 + $0x80] sm:$0xf] %v174
  %177 = vst [vmem:[#allocation2 + $0x88] sm:$0xf] %v175
  %s178 = scalar_lea.vmem %s0, 8
  %v179 = vld [vmem:[%s178] sm:$0xff]
  %v181 = vcombine.high %v179, %v179
  %183 = vrot.lane.b32.xlu0 %v179, 17
  %v184 = vpop.permute.xlu0 %183
  %185 = vrot.lane.b32.xlu0 %v181, 17
  %v186 = vpop.permute.xlu0 %185
  %v187 = vsel %vm28, %v184, %v186
  %v188 = vsel %vm28, %v186, %v184
  %v189 = vld [vmem:[%s2] sm:$0xf]
  %v190 = vld [vmem:[%s2 + $0x8] sm:$0xf]
  %v191 = vmul.f32 %v188, %v189
  %v192 = vmul.f32 %v187, %v190
  %193 = vst [vmem:[#allocation2 + $0x10] sm:$0xf] %v191
  %194 = vst [vmem:[#allocation2 + $0x18] sm:$0xf] %v192
  %195 = vrot.lane.b32.xlu0 %v179, 16
  %v196 = vpop.permute.xlu0 %195
  %197 = vrot.lane.b32.xlu0 %v181, 16
  %v198 = vpop.permute.xlu0 %197
  %v199 = vsel %vm41, %v196, %v198
  %v200 = vsel %vm41, %v198, %v196
  %v201 = vld [vmem:[%s2] sm:$0xf0]
  %v202 = vld [vmem:[%s2 + $0x8] sm:$0xf0]
  %v205 = vrot.slane %v201, 4
  %v206 = vrot.slane %v202, 4
  %v209 = vmul.f32 %v200, %v205
  %v210 = vmul.f32 %v199, %v206
  %v213 = vrot.slane %v209, 4
  %v214 = vrot.slane %v210, 4
  %217 = vst [vmem:[#allocation2 + $0x10] sm:$0xf0] %v213
  %218 = vst [vmem:[#allocation2 + $0x18] sm:$0xf0] %v214
  %219 = vrot.lane.b32.xlu0 %v179, 15
  %v220 = vpop.permute.xlu0 %219
  %221 = vrot.lane.b32.xlu0 %v181, 15
  %v222 = vpop.permute.xlu0 %221
  %v223 = vsel %vm66, %v220, %v222
  %v224 = vsel %vm66, %v222, %v220
  %v225 = vld [vmem:[%s2 + $0x10] sm:$0xf]
  %v226 = vld [vmem:[%s2 + $0x18] sm:$0xf]
  %v227 = vmul.f32 %v224, %v225
  %v228 = vmul.f32 %v223, %v226
  %229 = vst [vmem:[#allocation2 + $0x30] sm:$0xf] %v227
  %230 = vst [vmem:[#allocation2 + $0x38] sm:$0xf] %v228
  %231 = vrot.lane.b32.xlu0 %v179, 1
  %v232 = vpop.permute.xlu0 %231
  %233 = vrot.lane.b32.xlu0 %v181, 1
  %v234 = vpop.permute.xlu0 %233
  %v235 = vsel %vm79, %v232, %v234
  %v236 = vsel %vm79, %v234, %v232
  %v237 = vld [vmem:[%s2 + $0x10] sm:$0xf0]
  %v238 = vld [vmem:[%s2 + $0x18] sm:$0xf0]
  %v241 = vrot.slane %v237, 4
  %v242 = vrot.slane %v238, 4
  %v245 = vmul.f32 %v236, %v241
  %v246 = vmul.f32 %v235, %v242
  %v249 = vrot.slane %v245, 4
  %v250 = vrot.slane %v246, 4
  %253 = vst [vmem:[#allocation2 + $0x30] sm:$0xf0] %v249
  %254 = vst [vmem:[#allocation2 + $0x38] sm:$0xf0] %v250
  %255 = vst [vmem:[#allocation2 + $0x50] sm:$0xf] %v179
  %256 = vst [vmem:[#allocation2 + $0x58] sm:$0xf] %v181
  %257 = vrot.lane.b32.xlu0 %v179, 127
  %v258 = vpop.permute.xlu0 %257
  %259 = vrot.lane.b32.xlu0 %v181, 127
  %v260 = vpop.permute.xlu0 %259
  %v261 = vsel %vm106, %v258, %v260
  %v262 = vsel %vm106, %v260, %v258
  %v263 = vld [vmem:[%s2 + $0x20] sm:$0xf]
  %v264 = vld [vmem:[%s2 + $0x28] sm:$0xf]
  %v265 = vmul.f32 %v261, %v263
  %v266 = vmul.f32 %v262, %v264
  %v269 = vrot.slane %v265, 4
  %v270 = vrot.slane %v266, 4
  %273 = vst [vmem:[#allocation2 + $0x50] sm:$0xf0] %v269
  %274 = vst [vmem:[#allocation2 + $0x58] sm:$0xf0] %v270
  %275 = vrot.lane.b32.xlu0 %v179, 113
  %v276 = vpop.permute.xlu0 %275
  %277 = vrot.lane.b32.xlu0 %v181, 113
  %v278 = vpop.permute.xlu0 %277
  %v279 = vsel %vm125, %v276, %v278
  %v280 = vsel %vm125, %v278, %v276
  %v281 = vld [vmem:[%s2 + $0x20] sm:$0xf0]
  %v282 = vld [vmem:[%s2 + $0x28] sm:$0xf0]
  %v285 = vrot.slane %v281, 4
  %v286 = vrot.slane %v282, 4
  %v289 = vmul.f32 %v279, %v285
  %v290 = vmul.f32 %v280, %v286
  %291 = vst [vmem:[#allocation2 + $0x70] sm:$0xf] %v289
  %292 = vst [vmem:[#allocation2 + $0x78] sm:$0xf] %v290
  %293 = vrot.lane.b32.xlu0 %v179, 112
  %v294 = vpop.permute.xlu0 %293
  %295 = vrot.lane.b32.xlu0 %v181, 112
  %v296 = vpop.permute.xlu0 %295
  %v297 = vsel %vm144, %v294, %v296
  %v298 = vsel %vm144, %v296, %v294
  %v299 = vld [vmem:[%s2 + $0x30] sm:$0xf]
  %v300 = vld [vmem:[%s2 + $0x38] sm:$0xf]
  %v301 = vmul.f32 %v297, %v299
  %v302 = vmul.f32 %v298, %v300
  %v305 = vrot.slane %v301, 4
  %v306 = vrot.slane %v302, 4
  %309 = vst [vmem:[#allocation2 + $0x70] sm:$0xf0] %v305
  %310 = vst [vmem:[#allocation2 + $0x78] sm:$0xf0] %v306
  %311 = vrot.lane.b32.xlu0 %v179, 111
  %v312 = vpop.permute.xlu0 %311
  %313 = vrot.lane.b32.xlu0 %v181, 111
  %v314 = vpop.permute.xlu0 %313
  %v315 = vsel %vm163, %v312, %v314
  %v316 = vsel %vm163, %v314, %v312
  %v317 = vld [vmem:[%s2 + $0x30] sm:$0xf0]
  %v318 = vld [vmem:[%s2 + $0x38] sm:$0xf0]
  %v321 = vrot.slane %v317, 4
  %v322 = vrot.slane %v318, 4
  %v325 = vmul.f32 %v315, %v321
  %v326 = vmul.f32 %v316, %v322
  %327 = vst [vmem:[#allocation2 + $0x90] sm:$0xf] %v325
  %328 = vst [vmem:[#allocation2 + $0x98] sm:$0xf] %v326
  %v329 = vld [vmem:[%s1] sm:$0xff]
  %v330 = vld [vmem:[%s1 + $0x8] sm:$0xff]
  %v331 = vld [vmem:[%s1 + $0x10] sm:$0xff]
  %v332 = vld [vmem:[%s1 + $0x18] sm:$0xff]
  %v333 = vld [vmem:[#allocation2] sm:$0xff]
  %v334 = vld [vmem:[#allocation2 + $0x8] sm:$0xff]
  %v335 = vld [vmem:[#allocation2 + $0x10] sm:$0xff]
  %v336 = vld [vmem:[#allocation2 + $0x18] sm:$0xff]
  %v337 = vld [vmem:[#allocation2 + $0x20] sm:$0xff]
  %v338 = vld [vmem:[#allocation2 + $0x28] sm:$0xff]
  %v339 = vld [vmem:[#allocation2 + $0x30] sm:$0xff]
  %v340 = vld [vmem:[#allocation2 + $0x38] sm:$0xff]
  %v341 = vld [vmem:[#allocation2 + $0x40] sm:$0xff]
  %v342 = vld [vmem:[#allocation2 + $0x48] sm:$0xff]
  %v343 = vld [vmem:[#allocation2 + $0x50] sm:$0xff]
  %v344 = vld [vmem:[#allocation2 + $0x58] sm:$0xff]
  %v345 = vld [vmem:[#allocation2 + $0x60] sm:$0xff]
  %v346 = vld [vmem:[#allocation2 + $0x68] sm:$0xff]
  %v347 = vld [vmem:[#allocation2 + $0x70] sm:$0xff]
  %v348 = vld [vmem:[#allocation2 + $0x78] sm:$0xff]
  %v349 = vld [vmem:[#allocation2 + $0x80] sm:$0xff]
  %v350 = vld [vmem:[#allocation2 + $0x88] sm:$0xff]
  %v351 = vld [vmem:[#allocation2 + $0x90] sm:$0xff]
  %v352 = vld [vmem:[#allocation2 + $0x98] sm:$0xff]
  %vm353 = vcmask 326656
  %v355 = vsel %vm353, %v329, 0
  %v358 = vsel %vm353, %v330, 0
  %v361 = vsel %vm353, %v331, 0
  %v364 = vsel %vm353, %v332, 0
  %366 = vmatprep.subr.mxu0 %v334
  %367 = vmatpush1.msra.mxu0 %v333
  %368 = vmatprep.subr.mxu0 %v338
  %369 = vmatpush1.msra.mxu0 %v337
  %370 = vmatprep.subr.mxu0 %v342
  %371 = vmatpush1.msra.mxu0 %v341
  %372 = vmatprep.subr.mxu0 %v346
  %373 = vmatpush1.msra.mxu0 %v345
  %374 = vmatprep.subr.mxu0 %v350
  %375 = vmatpush1.msra.mxu0 %v349
  %376 = vmatprep.subr.mxu0 0.0
  %377 = vmatpush1.msra.mxu0 0.0
  %378 = vmatprep.subr.mxu0 0.0
  %379 = vmatpush1.msra.mxu0 0.0
  %380 = vmatprep.subr.mxu0 0.0
  %381 = vmatpush1.msra.mxu0 0.0
  %382 = vmatprep.subr.mxu0 0.0
  %383 = vmatpush1.msra.mxu0 0.0
  %384 = vmatprep.subr.mxu0 0.0
  %385 = vmatpush1.msra.mxu0 0.0
  %386 = vmatprep.subr.mxu0 0.0
  %387 = vmatpush1.msra.mxu0 0.0
  %388 = vmatprep.subr.mxu0 0.0
  %389 = vmatpush1.msra.mxu0 0.0
  %390 = vmatprep.subr.mxu0 0.0
  %391 = vmatpush1.msra.mxu0 0.0
  %392 = vmatprep.subr.mxu0 0.0
  %393 = vmatpush1.msra.mxu0 0.0
  %394 = vmatprep.subr.mxu0 0.0
  %395 = vmatpush1.msra.mxu0 0.0
  %396 = vmatprep.subr.mxu0 0.0
  %397 = vmatpush1.msra.mxu0 0.0
  %398 = vmatprep.subr.mxu0 0.0
  %399 = vmatpush1.msra.mxu0 0.0
  %400 = vmatprep.subr.mxu0 0.0
  %401 = vmatpush1.msra.mxu0 0.0
  %402 = vmatprep.subr.mxu0 0.0
  %403 = vmatpush1.msra.mxu0 0.0
  %404 = vmatprep.subr.mxu0 0.0
  %405 = vmatpush1.msra.mxu0 0.0
  %406 = vmatprep.subr.mxu0 0.0
  %407 = vmatpush1.msra.mxu0 0.0
  %408 = vmatprep.subr.mxu0 0.0
  %409 = vmatpush1.msra.mxu0 0.0
  %410 = vmatprep.subr.mxu0 0.0
  %411 = vmatpush1.msra.mxu0 0.0
  %412 = vmatprep.subr.mxu0 0.0
  %413 = vmatpush1.msra.mxu0 0.0
  %414 = vmatprep.subr.mxu0 0.0
  %415 = vmatpush1.msra.mxu0 0.0
  %416 = vmatprep.subr.mxu0 0.0
  %417 = vmatpush1.msra.mxu0 0.0
  %418 = vmatprep.subr.mxu0 0.0
  %419 = vmatpush1.msra.mxu0 0.0
  %420 = vmatprep.subr.mxu0 0.0
  %421 = vmatpush1.msra.mxu0 0.0
  %422 = vmatprep.subr.mxu0 0.0
  %423 = vmatpush1.msra.mxu0 0.0
  %424 = vmatprep.subr.mxu0 0.0
  %425 = vmatpush1.msra.mxu0 0.0
  %426 = vmatprep.subr.mxu0 0.0
  %427 = vmatpush1.msra.mxu0 0.0
  %428 = vmatprep.subr.mxu0 0.0
  %429 = vmatpush1.msra.mxu0 0.0
  %430 = vmatprep.mubr.f32.mxu0 0.0
  %431 = vmatmul.mubr.f32.gmra.mrb[0].mxu0 %v355
  %v432 = vpop.f32.mrb[0].mxu0
  %v433 = vadd.f32 0.0, %v432
  %v434 = vpop.f32.mrb[0].mxu0
  %v435 = vadd.f32 0.0, %v434
  %436 = vmatprep.mubr.f32.mxu0 0.0
  %437 = vmatmul.mubr.f32.gmra.mrb[0].mxu0 %v358
  %v438 = vpop.f32.mrb[0].mxu0
  %v439 = vadd.f32 0.0, %v438
  %v440 = vpop.f32.mrb[0].mxu0
  %v441 = vadd.f32 0.0, %v440
  %442 = vmatprep.mubr.f32.mxu0 0.0
  %443 = vmatmul.mubr.f32.gmra.mrb[0].mxu0 %v361
  %v444 = vpop.f32.mrb[0].mxu0
  %v445 = vadd.f32 0.0, %v444
  %v446 = vpop.f32.mrb[0].mxu0
  %v447 = vadd.f32 0.0, %v446
  %448 = vmatprep.mubr.f32.mxu0 0.0
  %449 = vmatmul.mubr.f32.gmra.mrb[0].mxu0 %v364
  %v450 = vpop.f32.mrb[0].mxu0
  %v451 = vadd.f32 0.0, %v450
  %v452 = vpop.f32.mrb[0].mxu0
  %v453 = vadd.f32 0.0, %v452
  %454 = vdwg.mxu0
  %455 = vmatprep.subr.mxu0 %v336
  %456 = vmatpush1.msra.mxu0 %v335
  %457 = vmatprep.subr.mxu0 %v340
  %458 = vmatpush1.msra.mxu0 %v339
  %459 = vmatprep.subr.mxu0 %v344
  %460 = vmatpush1.msra.mxu0 %v343
  %461 = vmatprep.subr.mxu0 %v348
  %462 = vmatpush1.msra.mxu0 %v347
  %463 = vmatprep.subr.mxu0 %v352
  %464 = vmatpush1.msra.mxu0 %v351
  %465 = vmatprep.subr.mxu0 0.0
  %466 = vmatpush1.msra.mxu0 0.0
  %467 = vmatprep.subr.mxu0 0.0
  %468 = vmatpush1.msra.mxu0 0.0
  %469 = vmatprep.subr.mxu0 0.0
  %470 = vmatpush1.msra.mxu0 0.0
  %471 = vmatprep.subr.mxu0 0.0
  %472 = vmatpush1.msra.mxu0 0.0
  %473 = vmatprep.subr.mxu0 0.0
  %474 = vmatpush1.msra.mxu0 0.0
  %475 = vmatprep.subr.mxu0 0.0
  %476 = vmatpush1.msra.mxu0 0.0
  %477 = vmatprep.subr.mxu0 0.0
  %478 = vmatpush1.msra.mxu0 0.0
  %479 = vmatprep.subr.mxu0 0.0
  %480 = vmatpush1.msra.mxu0 0.0
  %481 = vmatprep.subr.mxu0 0.0
  %482 = vmatpush1.msra.mxu0 0.0
  %483 = vmatprep.subr.mxu0 0.0
  %484 = vmatpush1.msra.mxu0 0.0
  %485 = vmatprep.subr.mxu0 0.0
  %486 = vmatpush1.msra.mxu0 0.0
  %487 = vmatprep.subr.mxu0 0.0
  %488 = vmatpush1.msra.mxu0 0.0
  %489 = vmatprep.subr.mxu0 0.0
  %490 = vmatpush1.msra.mxu0 0.0
  %491 = vmatprep.subr.mxu0 0.0
  %492 = vmatpush1.msra.mxu0 0.0
  %493 = vmatprep.subr.mxu0 0.0
  %494 = vmatpush1.msra.mxu0 0.0
  %495 = vmatprep.subr.mxu0 0.0
  %496 = vmatpush1.msra.mxu0 0.0
  %497 = vmatprep.subr.mxu0 0.0
  %498 = vmatpush1.msra.mxu0 0.0
  %499 = vmatprep.subr.mxu0 0.0
  %500 = vmatpush1.msra.mxu0 0.0
  %501 = vmatprep.subr.mxu0 0.0
  %502 = vmatpush1.msra.mxu0 0.0
  %503 = vmatprep.subr.mxu0 0.0
  %504 = vmatpush1.msra.mxu0 0.0
  %505 = vmatprep.subr.mxu0 0.0
  %506 = vmatpush1.msra.mxu0 0.0
  %507 = vmatprep.subr.mxu0 0.0
  %508 = vmatpush1.msra.mxu0 0.0
  %509 = vmatprep.subr.mxu0 0.0
  %510 = vmatpush1.msra.mxu0 0.0
  %511 = vmatprep.subr.mxu0 0.0
  %512 = vmatpush1.msra.mxu0 0.0
  %513 = vmatprep.subr.mxu0 0.0
  %514 = vmatpush1.msra.mxu0 0.0
  %515 = vmatprep.subr.mxu0 0.0
  %516 = vmatpush1.msra.mxu0 0.0
  %517 = vmatprep.subr.mxu0 0.0
  %518 = vmatpush1.msra.mxu0 0.0
  %519 = vmatprep.mubr.f32.mxu0 0.0
  %520 = vmatmul.mubr.f32.gmra.mrb[0].mxu0 %v355
  %v521 = vpop.f32.mrb[0].mxu0
  %v522 = vadd.f32 0.0, %v521
  %v523 = vpop.f32.mrb[0].mxu0
  %v524 = vadd.f32 0.0, %v523
  %525 = vmatprep.mubr.f32.mxu0 0.0
  %526 = vmatmul.mubr.f32.gmra.mrb[0].mxu0 %v358
  %v527 = vpop.f32.mrb[0].mxu0
  %v528 = vadd.f32 0.0, %v527
  %v529 = vpop.f32.mrb[0].mxu0
  %v530 = vadd.f32 0.0, %v529
  %531 = vmatprep.mubr.f32.mxu0 0.0
  %532 = vmatmul.mubr.f32.gmra.mrb[0].mxu0 %v361
  %v533 = vpop.f32.mrb[0].mxu0
  %v534 = vadd.f32 0.0, %v533
  %v535 = vpop.f32.mrb[0].mxu0
  %v536 = vadd.f32 0.0, %v535
  %537 = vmatprep.mubr.f32.mxu0 0.0
  %538 = vmatmul.mubr.f32.gmra.mrb[0].mxu0 %v364
  %v539 = vpop.f32.mrb[0].mxu0
  %v540 = vadd.f32 0.0, %v539
  %v541 = vpop.f32.mrb[0].mxu0
  %v542 = vadd.f32 0.0, %v541
  %543 = vdwg.mxu0
  %v544 = vmax.f32 %v433, 0.0
  %v545 = vmax.f32 %v435, 0.0
  %v546 = vmax.f32 %v522, 0.0
  %v547 = vmax.f32 %v524, 0.0
  %v548 = vmax.f32 %v439, 0.0
  %v549 = vmax.f32 %v441, 0.0
  %v550 = vmax.f32 %v528, 0.0
  %v551 = vmax.f32 %v530, 0.0
  %v552 = vmax.f32 %v445, 0.0
  %v553 = vmax.f32 %v447, 0.0
  %v554 = vmax.f32 %v534, 0.0
  %v555 = vmax.f32 %v536, 0.0
  %v556 = vmax.f32 %v451, 0.0
  %v557 = vmax.f32 %v453, 0.0
  %v558 = vmax.f32 %v540, 0.0
  %v559 = vmax.f32 %v542, 0.0
  %560 = vst [vmem:[%s3] sm:$0xff] %v544
  %561 = vst [vmem:[%s3 + $0x8] sm:$0xff] %v545
  %562 = vst [vmem:[%s3 + $0x10] sm:$0xff] %v548
  %563 = vst [vmem:[%s3 + $0x18] sm:$0xff] %v549
  %564 = vst [vmem:[%s3 + $0x20] sm:$0xff] %v552
  %565 = vst [vmem:[%s3 + $0x28] sm:$0xff] %v553
  %566 = vst [vmem:[%s3 + $0x30] sm:$0xff] %v556
  %567 = vst [vmem:[%s3 + $0x38] sm:$0xff] %v557
  %s568 = scalar_lea.vmem %s3, 64
  %569 = vst [vmem:[%s568] sm:$0xff] %v546
  %570 = vst [vmem:[%s568 + $0x8] sm:$0xff] %v547
  %571 = vst [vmem:[%s568 + $0x10] sm:$0xff] %v550
  %572 = vst [vmem:[%s568 + $0x18] sm:$0xff] %v551
  %573 = vst [vmem:[%s568 + $0x20] sm:$0xff] %v554
  %574 = vst [vmem:[%s568 + $0x28] sm:$0xff] %v555
  %575 = vst [vmem:[%s568 + $0x30] sm:$0xff] %v558
  %576 = vst [vmem:[%s568 + $0x38] sm:$0xff] %v559
  // Predicated region
  $region14: #{embedding_net_forward.1} parent=0 // pred_check
    _
  $region15: #{embedding_net_forward.1} parent=0 // pred_check_branch
    %578 = sbr.rel (0) target = $region17
  $region16: #{embedding_net_forward.1} parent=0 // pred_region
    _
  $region17: #{embedding_net_forward.1} parent=0 // pred_fallthru
    _
  // Predicated region
  $region18: #{embedding_net_forward.1} parent=0 // pred_check
    _
  $region19: #{embedding_net_forward.1} parent=0 // pred_check_branch
    %580 = sbr.rel (0) target = $region21
  $region20: #{embedding_net_forward.1} parent=0 // pred_region
    _
  $region21: #{embedding_net_forward.1} parent=0 // pred_fallthru
    _

</llo_original>
